<compile_context>
chip_gen: v7x
topology: tpu7x:2x2x1
jax: 0.10.0
libtpu: 0.0.40
codegen_flags: <defaults>
</compile_context>

<pallas_src>
import functools

import jax
import jax.numpy as jnp
from jax.experimental import pallas as pl
from jax.experimental.pallas import tpu as pltpu


def _ce_kernel(logits_ref, target_ref, nll_ref, m_ref, l_ref, xt_ref, *,
               padding_idx, n_rows, vocab, tile_rows, tile_v, upcast):
    r = pl.program_id(0)            # row-tile index   ("parallel")
    v = pl.program_id(1)            # vocab-tile index ("arbitrary", innermost)
    nv = pl.num_programs(1)

    @pl.when(v == 0)
    def _():
        m_ref[...] = jnp.full((tile_rows, 1), -jnp.inf, jnp.float32)
        l_ref[...] = jnp.zeros((tile_rows, 1), jnp.float32)
        xt_ref[...] = jnp.zeros((tile_rows, 1), jnp.float32)

    xb = logits_ref[...]
    if upcast:                      # f32 math everywhere (v5e / non-bf16 dtypes)
        xb = xb.astype(jnp.float32)
    t = target_ref[...]             # (TM, 1) int32

    # Local lane ids + shifted target: no per-element global-offset add.
    col = jax.lax.broadcasted_iota(jnp.int32, (tile_rows, tile_v), 1)
    t_local = t - v * tile_v

    def update(x):
        # Target-logit gather via one-hot compare/select.  Compare/select are
        # exact in the tile's native dtype; summing zeros is exact, so the
        # cross-tile accumulation happens in f32.
        sel = jnp.where(col == t_local, x, jnp.zeros((), x.dtype))
        xt_ref[...] += jnp.sum(sel, axis=-1, keepdims=True).astype(jnp.float32)
        # Online (flash-style) log-sum-exp: max is exact in native dtype,
        # exp / accumulation in f32.
        m_chunk = jnp.max(x, axis=-1, keepdims=True).astype(jnp.float32)
        m_new = jnp.maximum(m_ref[...], m_chunk)
        l_ref[...] = (l_ref[...] * jnp.exp(m_ref[...] - m_new)
                      + jnp.sum(jnp.exp(x.astype(jnp.float32) - m_new),
                                axis=-1, keepdims=True))
        m_ref[...] = m_new

    if vocab % tile_v != 0:
        # Ragged vocab: only the LAST vocab tile pays the compare+select mask;
        # interior tiles run the unmasked path.
        @pl.when(v == nv - 1)
        def _():
            lim = vocab - v * tile_v
            update(jnp.where(col < lim, xb, jnp.asarray(-1e30, xb.dtype)))

        @pl.when(v != nv - 1)
        def _():
            update(xb)
    else:
        update(xb)

    @pl.when(v == nv - 1)
    def _():
        lse = jnp.log(l_ref[...]) + m_ref[...]
        nll = lse - xt_ref[...]                            # -log_softmax(x)[target]
        valid = t != padding_idx                           # ignore_index rows
        if n_rows % tile_rows != 0:
            row = r * tile_rows + jax.lax.broadcasted_iota(jnp.int32, t.shape, 0)
            valid = jnp.logical_and(valid, row < n_rows)   # tail rows of last block
        nll_ref[...] = jnp.where(valid, nll, 0.0)


def _device_kind():
    try:
        devs = jax.devices()
        return devs[0].device_kind.lower() if devs else ""
    except Exception:
        return ""


def _round_up(a, b):
    return (a + b - 1) // b * b


def cross_entropy_loss(logits, target, padding_idx, *, reduce=True,
                       tile_rows=None, tile_v=None, block_bytes=None):
    """Equivalent of CrossEntropyCriterionWCustomMetrics.forward.

    logits: float array [..., V] (f32 or bf16; bf16 halves HBM traffic and is
    the biggest perf lever — cast in the producing matmul's epilogue).
    target: int array [...].
    reduce=True  -> scalar summed NLL (ignoring padding_idx targets), f32.
    reduce=False -> per-token NLL vector [N], 0 at ignored positions.
    """
    V = logits.shape[-1]
    logits2d = logits.reshape(-1, V)
    target2d = target.reshape(-1, 1).astype(jnp.int32)
    N = logits2d.shape[0]
    dtype = jnp.dtype(logits2d.dtype)
    itemsize = dtype.itemsize
    row_mult = 16 if itemsize < 4 else 8        # packed sublane tile for bf16

    # --- generation-aware knobs ------------------------------------------------
    kind = _device_kind()
    is_v7 = "v7" in kind
    # chips whose TensorCores are fed by the "parallel" dimension semantics
    num_cores = 2 if (is_v7 or "v4" in kind or "v5p" in kind) else 1
    bf16_native = ("v6" in kind) or is_v7       # v5e VPU has no bf16
    upcast = not (dtype == jnp.dtype(jnp.bfloat16) and bf16_native) and \
        dtype != jnp.dtype(jnp.float32)

    if block_bytes is None:
        # 8 MiB: inside the 8-16 MiB sweet spot for v5e/v6e (128 MiB VMEM) and
        # the 4-8 MiB budget for v7x (64 MiB per TensorCore).
        block_bytes = 8 * 1024 * 1024
    vmem_limit = (48 if is_v7 else 64) * 1024 * 1024

    # --- vocab tile: prefer the full vocab (contiguous row slabs, no online
    # rescale, single inner step) whenever a row_mult-row slab fits -------------
    if tile_v is None:
        if V % 128 != 0 or row_mult * V * itemsize <= block_bytes:
            tile_v = V
        else:
            max_tv = max(128, (block_bytes // (row_mult * itemsize)) // 128 * 128)
            tile_v = min(V, max_tv)
            if V % tile_v != 0:
                # prefer a divisor of V (drops the tail mask entirely) unless it
                # would shrink the tile by more than 2x
                for cand in range(tile_v - 128, 0, -128):
                    if V % cand == 0:
                        if cand * 2 >= tile_v:
                            tile_v = cand
                        break
    tile_v = min(tile_v, V)

    # --- row tile: fill ~block_bytes; keep >= num_cores row tiles so both
    # TensorCores get work on v7x / megacore chips ------------------------------
    if tile_rows is None:
        tr = block_bytes // (tile_v * itemsize)
        tr = max(row_mult, min(1024, (tr // row_mult) * row_mult))
        if num_cores > 1 and N > row_mult:
            tr = min(tr, max(row_mult, _round_up(pl.cdiv(N, num_cores), row_mult)))
        tile_rows = N if tr >= N else tr

    grid = (pl.cdiv(N, tile_rows), pl.cdiv(V, tile_v))

    kernel = functools.partial(
        _ce_kernel, padding_idx=padding_idx, n_rows=N, vocab=V,
        tile_rows=tile_rows, tile_v=tile_v, upcast=upcast)

    nll = pl.pallas_call(
        kernel,
        out_shape=jax.ShapeDtypeStruct((N, 1), jnp.float32),
        grid_spec=pltpu.PrefetchScalarGridSpec(
            num_scalar_prefetch=0,
            grid=grid,
            in_specs=[
                pl.BlockSpec((tile_rows, tile_v), lambda r, v: (r, v)),
                pl.BlockSpec((tile_rows, 1), lambda r, v: (r, 0)),
            ],
            out_specs=pl.BlockSpec((tile_rows, 1), lambda r, v: (r, 0)),
            scratch_shapes=[
                pltpu.VMEM((tile_rows, 1), jnp.float32),   # running max m
                pltpu.VMEM((tile_rows, 1), jnp.float32),   # running sum l
                pltpu.VMEM((tile_rows, 1), jnp.float32),   # gathered target logit
            ],
        ),
        compiler_params=pltpu.CompilerParams(
            dimension_semantics=("parallel", "arbitrary"),
            vmem_limit_bytes=vmem_limit,
        ),
        cost_estimate=pl.CostEstimate(
            flops=5 * N * V,
            transcendentals=N * V,
            bytes_accessed=N * V * itemsize + 2 * N * 4,
        ),
    )(logits2d, target2d)

    nll = nll[:, 0]
    if reduce:
        return jnp.sum(nll)
    return nll
    # TODO(synk): the module's docstring mentions (loss, sample_size, logging)
    # but its code returns only the loss; we mirror the code.


if __name__ == "__main__":
    key = jax.random.PRNGKey(0)
    padding_idx = 1

    def reference(logits, target, pad, reduce=True):
        V = logits.shape[-1]
        lp = jax.nn.log_softmax(logits.astype(jnp.float32), axis=-1).reshape(-1, V)
        t = target.reshape(-1).astype(jnp.int32)
        picked = jnp.take_along_axis(lp, t[:, None], axis=-1)[:, 0]
        nll = jnp.where(t != pad, -picked, 0.0)
        return jnp.sum(nll) if reduce else nll

    # ---- Test 1: small f32 (batch=2, seq=8, vocab=128), auto tiling ----
    B, T, V = 2, 8, 128
    k1, k2 = jax.random.split(key)
    logits = jax.random.normal(k1, (B, T, V), dtype=jnp.float32)
    target = jax.random.randint(k2, (B, T), 0, V, dtype=jnp.int32)
    target = target.at[0, :3].set(padding_idx)

    loss = jax.block_until_ready(cross_entropy_loss(logits, target, padding_idx))
    ref = reference(logits, target, padding_idx)
    assert jnp.allclose(loss, ref, rtol=1e-5, atol=1e-5), (loss, ref)

    per_tok = jax.block_until_ready(
        cross_entropy_loss(logits, target, padding_idx, reduce=False))
    ref_tok = reference(logits, target, padding_idx, reduce=False)
    assert jnp.allclose(per_tok, ref_tok, rtol=1e-5, atol=1e-5)

    # ---- Test 2: bf16 logits, multiple row + vocab tiles (online-LSE path) ----
    B2, T2, V2 = 2, 24, 384
    k3, k4 = jax.random.split(k1)
    logits2 = jax.random.normal(k3, (B2, T2, V2), dtype=jnp.float32).astype(jnp.bfloat16)
    target2 = jax.random.randint(k4, (B2, T2), 0, V2, dtype=jnp.int32)
    target2 = target2.at[1, -4:].set(padding_idx)
    loss2 = jax.block_until_ready(
        cross_entropy_loss(logits2, target2, padding_idx, tile_rows=16, tile_v=128))
    ref2 = reference(logits2, target2, padding_idx)
    assert jnp.allclose(loss2, ref2, rtol=2e-3, atol=2e-3), (loss2, ref2)

    # ---- Test 3: N not divisible by the row tile (row tail-masking path) ----
    B3, T3, V3 = 3, 5, 128
    k5, k6 = jax.random.split(k2)
    logits3 = jax.random.normal(k5, (B3, T3, V3), dtype=jnp.float32)
    target3 = jax.random.randint(k6, (B3, T3), 0, V3, dtype=jnp.int32)
    target3 = target3.at[2, :2].set(padding_idx)
    loss3 = jax.block_until_ready(
        cross_entropy_loss(logits3, target3, padding_idx, tile_rows=8))
    ref3 = reference(logits3, target3, padding_idx)
    assert jnp.allclose(loss3, ref3, rtol=1e-5, atol=1e-5), (loss3, ref3)

    # ---- Test 4: vocab not divisible by the vocab tile (masked-last-tile path) ----
    B4, T4, V4 = 2, 8, 384
    k7, k8 = jax.random.split(k3)
    logits4 = jax.random.normal(k7, (B4, T4, V4), dtype=jnp.float32)
    target4 = jax.random.randint(k8, (B4, T4), 0, V4, dtype=jnp.int32)
    target4 = target4.at[0, :2].set(padding_idx)
    loss4 = jax.block_until_ready(
        cross_entropy_loss(logits4, target4, padding_idx, tile_rows=16, tile_v=256))
    ref4 = reference(logits4, target4, padding_idx)
    assert jnp.allclose(loss4, ref4, rtol=1e-5, atol=1e-5), (loss4, ref4)

    print("KERNEL_OK")
</pallas_src>

<mosaic_0001>
module attributes {stable_mosaic.version = 11 : i64} {
  func.func @_ce_kernel(%arg0: i32, %arg1: i32, %arg2: memref<16x128xf32, #tpu.memory_space<vmem>>, %arg3: memref<16x1xi32, #tpu.memory_space<vmem>>, %arg4: memref<16x1xf32, #tpu.memory_space<vmem>>, %arg5: memref<16x1xf32, #tpu.memory_space<vmem>>, %arg6: memref<16x1xf32, #tpu.memory_space<vmem>>, %arg7: memref<16x1xf32, #tpu.memory_space<vmem>>) attributes {dimension_semantics = [#tpu.dimension_semantics<parallel>, #tpu.dimension_semantics<arbitrary>], iteration_bounds = array<i64: 1, 1>, scalar_prefetch = 0 : i64, scratch_operands = 3 : i64, tpu.core_type = #tpu.core_type<tc>, window_params = [{transform_indices = @transform_0, window_bounds = array<i64: 16, 128>}, {transform_indices = @transform_1, window_bounds = array<i64: 16, 1>}, {transform_indices = @transform_2, window_bounds = array<i64: 16, 1>}]} {
    %c0_i32 = arith.constant 0 : i32
    %0 = arith.cmpi eq, %arg1, %c0_i32 : i32
    %1 = arith.extui %0 : i1 to i32
    %c0_i32_0 = arith.constant 0 : i32
    %2 = arith.cmpi ne, %1, %c0_i32_0 : i32
    scf.if %2 {
      %cst_23 = arith.constant 0xFF800000 : f32
      %38 = vector.broadcast %cst_23 : f32 to vector<16x1xf32>
      %c0_24 = arith.constant 0 : index
      %c0_25 = arith.constant 0 : index
      %39 = vector.load %arg5[%c0_24, %c0_25] : memref<16x1xf32, #tpu.memory_space<vmem>>, vector<16x1xf32>
      tpu.vector_store %arg5[%c0_24, %c0_25], %38 {strides = array<i32>} : memref<16x1xf32, #tpu.memory_space<vmem>>, vector<16x1xf32>,
      %cst_26 = arith.constant 0.000000e+00 : f32
      %40 = vector.broadcast %cst_26 : f32 to vector<16x1xf32>
      %c0_27 = arith.constant 0 : index
      %c0_28 = arith.constant 0 : index
      %41 = vector.load %arg6[%c0_27, %c0_28] : memref<16x1xf32, #tpu.memory_space<vmem>>, vector<16x1xf32>
      tpu.vector_store %arg6[%c0_27, %c0_28], %40 {strides = array<i32>} : memref<16x1xf32, #tpu.memory_space<vmem>>, vector<16x1xf32>,
      %cst_29 = arith.constant 0.000000e+00 : f32
      %42 = vector.broadcast %cst_29 : f32 to vector<16x1xf32>
      %c0_30 = arith.constant 0 : index
      %c0_31 = arith.constant 0 : index
      %43 = vector.load %arg7[%c0_30, %c0_31] : memref<16x1xf32, #tpu.memory_space<vmem>>, vector<16x1xf32>
      tpu.vector_store %arg7[%c0_30, %c0_31], %42 {strides = array<i32>} : memref<16x1xf32, #tpu.memory_space<vmem>>, vector<16x1xf32>,
    } else {
    }
    %c0 = arith.constant 0 : index
    %c0_1 = arith.constant 0 : index
    %3 = vector.load %arg2[%c0, %c0_1] : memref<16x128xf32, #tpu.memory_space<vmem>>, vector<16x128xf32>
    %c0_2 = arith.constant 0 : index
    %c0_3 = arith.constant 0 : index
    %4 = vector.load %arg3[%c0_2, %c0_3] : memref<16x1xi32, #tpu.memory_space<vmem>>, vector<16x1xi32>
    %5 = tpu.iota {dimensions = array<i32: 1>} : vector<16x128xi32>
    %c128_i32 = arith.constant 128 : i32
    %6 = arith.muli %arg1, %c128_i32 : i32
    %7 = vector.broadcast %6 : i32 to vector<16x1xi32>
    %8 = arith.subi %4, %7 : vector<16x1xi32>
    %9 = vector.broadcast %8 : vector<16x1xi32> to vector<16x128xi32>
    %10 = arith.cmpi eq, %5, %9 : vector<16x128xi32>
    %cst = arith.constant 0.000000e+00 : f32
    %11 = vector.broadcast %cst : f32 to vector<16x128xf32>
    %12 = arith.select %10, %3, %11 : vector<16x128xi1>, vector<16x128xf32>
    %c0_4 = arith.constant 0 : index
    %c0_5 = arith.constant 0 : index
    %13 = vector.load %arg7[%c0_4, %c0_5] : memref<16x1xf32, #tpu.memory_space<vmem>>, vector<16x1xf32>
    %cst_6 = arith.constant dense<0.000000e+00> : vector<16xf32>
    %14 = vector.multi_reduction <add>, %12, %cst_6 [1] : vector<16x128xf32> to vector<16xf32>
    %15 = vector.shape_cast %14 : vector<16xf32> to vector<16x1xf32>
    %16 = arith.addf %13, %15 : vector<16x1xf32>
    %c0_7 = arith.constant 0 : index
    %c0_8 = arith.constant 0 : index
    %17 = vector.load %arg7[%c0_7, %c0_8] : memref<16x1xf32, #tpu.memory_space<vmem>>, vector<16x1xf32>
    tpu.vector_store %arg7[%c0_7, %c0_8], %16 {strides = array<i32>} : memref<16x1xf32, #tpu.memory_space<vmem>>, vector<16x1xf32>,
    %cst_9 = arith.constant dense<0xFF800000> : vector<16xf32>
    %18 = vector.multi_reduction <maximumf>, %3, %cst_9 [1] : vector<16x128xf32> to vector<16xf32>
    %19 = vector.shape_cast %18 : vector<16xf32> to vector<16x1xf32>
    %c0_10 = arith.constant 0 : index
    %c0_11 = arith.constant 0 : index
    %20 = vector.load %arg5[%c0_10, %c0_11] : memref<16x1xf32, #tpu.memory_space<vmem>>, vector<16x1xf32>
    %21 = arith.maximumf %20, %19 : vector<16x1xf32>
    %c0_12 = arith.constant 0 : index
    %c0_13 = arith.constant 0 : index
    %22 = vector.load %arg6[%c0_12, %c0_13] : memref<16x1xf32, #tpu.memory_space<vmem>>, vector<16x1xf32>
    %c0_14 = arith.constant 0 : index
    %c0_15 = arith.constant 0 : index
    %23 = vector.load %arg5[%c0_14, %c0_15] : memref<16x1xf32, #tpu.memory_space<vmem>>, vector<16x1xf32>
    %24 = arith.subf %23, %21 : vector<16x1xf32>
    %25 = math.exp %24 : vector<16x1xf32>
    %26 = arith.mulf %22, %25 : vector<16x1xf32>
    %27 = vector.broadcast %21 : vector<16x1xf32> to vector<16x128xf32>
    %28 = arith.subf %3, %27 : vector<16x128xf32>
    %29 = math.exp %28 : vector<16x128xf32>
    %cst_16 = arith.constant dense<0.000000e+00> : vector<16xf32>
    %30 = vector.multi_reduction <add>, %29, %cst_16 [1] : vector<16x128xf32> to vector<16xf32>
    %31 = vector.shape_cast %30 : vector<16xf32> to vector<16x1xf32>
    %32 = arith.addf %26, %31 : vector<16x1xf32>
    %c0_17 = arith.constant 0 : index
    %c0_18 = arith.constant 0 : index
    %33 = vector.load %arg6[%c0_17, %c0_18] : memref<16x1xf32, #tpu.memory_space<vmem>>, vector<16x1xf32>
    tpu.vector_store %arg6[%c0_17, %c0_18], %32 {strides = array<i32>} : memref<16x1xf32, #tpu.memory_space<vmem>>, vector<16x1xf32>,
    %c0_19 = arith.constant 0 : index
    %c0_20 = arith.constant 0 : index
    %34 = vector.load %arg5[%c0_19, %c0_20] : memref<16x1xf32, #tpu.memory_space<vmem>>, vector<16x1xf32>
    tpu.vector_store %arg5[%c0_19, %c0_20], %21 {strides = array<i32>} : memref<16x1xf32, #tpu.memory_space<vmem>>, vector<16x1xf32>,
    %c0_i32_21 = arith.constant 0 : i32
    %35 = arith.cmpi eq, %arg1, %c0_i32_21 : i32
    %36 = arith.extui %35 : i1 to i32
    %c0_i32_22 = arith.constant 0 : i32
    %37 = arith.cmpi ne, %36, %c0_i32_22 : i32
    scf.if %37 {
      %c0_23 = arith.constant 0 : index
      %c0_24 = arith.constant 0 : index
      %38 = vector.load %arg6[%c0_23, %c0_24] : memref<16x1xf32, #tpu.memory_space<vmem>>, vector<16x1xf32>
      %39 = math.log %38 : vector<16x1xf32>
      %c0_25 = arith.constant 0 : index
      %c0_26 = arith.constant 0 : index
      %40 = vector.load %arg5[%c0_25, %c0_26] : memref<16x1xf32, #tpu.memory_space<vmem>>, vector<16x1xf32>
      %41 = arith.addf %39, %40 : vector<16x1xf32>
      %c0_27 = arith.constant 0 : index
      %c0_28 = arith.constant 0 : index
      %42 = vector.load %arg7[%c0_27, %c0_28] : memref<16x1xf32, #tpu.memory_space<vmem>>, vector<16x1xf32>
      %43 = arith.subf %41, %42 : vector<16x1xf32>
      %c1_i32 = arith.constant 1 : i32
      %44 = vector.broadcast %c1_i32 : i32 to vector<16x1xi32>
      %45 = arith.cmpi ne, %4, %44 : vector<16x1xi32>
      %cst_29 = arith.constant 0.000000e+00 : f32
      %46 = vector.broadcast %cst_29 : f32 to vector<16x1xf32>
      %47 = arith.select %45, %43, %46 : vector<16x1xi1>, vector<16x1xf32>
      %c0_30 = arith.constant 0 : index
      %c0_31 = arith.constant 0 : index
      %48 = vector.load %arg4[%c0_30, %c0_31] : memref<16x1xf32, #tpu.memory_space<vmem>>, vector<16x1xf32>
      tpu.vector_store %arg4[%c0_30, %c0_31], %47 {strides = array<i32>} : memref<16x1xf32, #tpu.memory_space<vmem>>, vector<16x1xf32>,
    } else {
    }
    return
  }
  func.func @transform_0(%arg0: i32, %arg1: i32) -> (i32, i32) {
    %c0_i32 = arith.constant 0 : i32
    return %arg0, %arg1 : i32, i32
  }
  func.func @transform_1(%arg0: i32, %arg1: i32) -> (i32, i32) {
    %c0_i32 = arith.constant 0 : i32
    %c0_i32_0 = arith.constant 0 : i32
    return %arg0, %c0_i32 : i32, i32
  }
  func.func @transform_2(%arg0: i32, %arg1: i32) -> (i32, i32) {
    %c0_i32 = arith.constant 0 : i32
    %c0_i32_0 = arith.constant 0 : i32
    return %arg0, %c0_i32 : i32, i32
  }
}

</mosaic_0001>

<llo_original>
// kernel: tpu_custom_call.1
$region0: #{tpu_custom_call.1}
  #allocation0 [shape = 'u32[]', space=smem, size = 0x4, offset = 0x4, fixed_abs, tag = 'smem constant byte address 0x4 - core index']
  #allocation1 [shape = 'u32[144,128]{1,0:T(1,128)}', space=vmem, size = 0x12000, scoped, tag = 'internal scratch']
  #allocation2 [shape = 'f32[16,1]{1,0:T(8,128)}', space=vmem, size = 0x2000, scoped, tag = 'scratch operand']
  #allocation3 [shape = 'f32[16,1]{1,0:T(8,128)}', space=vmem, size = 0x2000, scoped, tag = 'scratch operand']
  #allocation4 [shape = 'f32[16,1]{1,0:T(8,128)}', space=vmem, size = 0x2000, scoped, tag = 'scratch operand']
  %s0 = inlined_call_operand.hbm [shape: f32[16,128], index: 0, kind: input, shape index: {}]
  %s1 = inlined_call_operand.hbm [shape: s32[16,1], index: 1, kind: input, shape index: {}]
  %s2 = inlined_call_operand.hbm [shape: f32[16,1], index: 2, kind: output, shape index: {}]
  %s3 = sld [smem:[#allocation0]]
  $region34: #{tpu_custom_call.1} parent=0
    _
  %s5 = ssub.s32 1, %s3
  %s6 = scalar_select 0, %s5, %s3
  $region1: #{tpu_custom_call.1} parent=0
    #allocation5 [shape = 'u8[8192]{0}', space=vmem, size = 0x2000, scoped, tag = 'input window, operand 0, single buffered']
    #allocation6 [shape = 's32[1]{0}', space=sflag, size = 0x4, scoped, tag = 'scoped memory for tpu_custom_call.1']
    #allocation7 [shape = 's32[1]{0}', space=sflag, size = 0x4, scoped, tag = 'scoped memory for tpu_custom_call.1']
    #allocation8 [shape = 'u8[8192]{0}', space=vmem, size = 0x2000, scoped, tag = 'input window, operand 1, single buffered']
    #allocation9 [shape = 's32[1]{0}', space=sflag, size = 0x4, scoped, tag = 'scoped memory for tpu_custom_call.1']
    #allocation10 [shape = 'u8[8192]{0}', space=vmem, size = 0x2000, scoped, tag = 'output window, operand 0, single buffered']
    %7 = vsyncpa [#allocation6], 0
    %8 = vsyncpa [#allocation9], 0
    %9 = vsyncpa [#allocation7], 0
    // Predicated region
    $region2: #{tpu_custom_call.1} parent=1 // pred_check
      _
    $region3: #{tpu_custom_call.1} parent=1 // pred_check_branch
      %11 = sbr.rel (0) target = $region5
    $region4: #{tpu_custom_call.1} parent=1 // pred_region
      %s13 = ssub.s32 256, 256
      %14 = vsyncadd [#allocation6], %s13
      %s15 = sshll.u32 [#allocation5], 4
      %s16 = int_to_ptr.vmem [resolvable:$true] %s15
      %21 = dma.hbm_to_vmem [thread:$0]  %s0, 256, %s16, [#allocation6], 128, 128, 8
    $region5: #{tpu_custom_call.1} parent=1 // pred_fallthru
      _
    // Predicated region
    $region6: #{tpu_custom_call.1} parent=1 // pred_check
      _
    $region7: #{tpu_custom_call.1} parent=1 // pred_check_branch
      %23 = sbr.rel (0) target = $region9
    $region8: #{tpu_custom_call.1} parent=1 // pred_region
      %s25 = ssub.s32 256, 256
      %26 = vsyncadd [#allocation9], %s25
      %s27 = sshll.u32 [#allocation8], 4
      %s28 = int_to_ptr.vmem [resolvable:$true] %s27
      %33 = dma.hbm_to_vmem [thread:$0]  %s1, 256, %s28, [#allocation9], 128, 128, 8
    $region9: #{tpu_custom_call.1} parent=1 // pred_fallthru
      _
    // Predicated region
    $region10: #{tpu_custom_call.1} parent=1 // pred_check
      _
    $region11: #{tpu_custom_call.1} parent=1 // pred_check_branch
      %35 = sbr.rel (0) target = $region13
    $region12: #{tpu_custom_call.1} parent=1 // pred_region
      %36 = dma.done [#allocation6], 256
    $region13: #{tpu_custom_call.1} parent=1 // pred_fallthru
      _
    // Predicated region
    $region14: #{tpu_custom_call.1} parent=1 // pred_check
      _
    $region15: #{tpu_custom_call.1} parent=1 // pred_check_branch
      %38 = sbr.rel (0) target = $region17
    $region16: #{tpu_custom_call.1} parent=1 // pred_region
      %39 = dma.done [#allocation9], 256
    $region17: #{tpu_custom_call.1} parent=1 // pred_fallthru
      _
    %p40 = scmp.eq.s32.totalorder 0, 0
    // Predicated region
    $region18: #{tpu_custom_call.1} parent=1 // pred_check
      %p41 = pneg %p40
    $region19: #{tpu_custom_call.1} parent=1 // pred_check_branch
      %43 = sbr.rel (%p41) target = $region21
    $region20: #{tpu_custom_call.1} parent=1 // pred_region
      %vm44 = vcmask 7168
      %45 = vst.msk [vmem:[#allocation2] sm:$0xff] %vm44, -inf
      %46 = vst.msk [vmem:[#allocation2 + $0x8] sm:$0xff] %vm44, -inf
      %47 = vst.msk [vmem:[#allocation3] sm:$0xff] %vm44, 0.0
      %48 = vst.msk [vmem:[#allocation3 + $0x8] sm:$0xff] %vm44, 0.0
      %49 = vst.msk [vmem:[#allocation4] sm:$0xff] %vm44, 0.0
      %50 = vst.msk [vmem:[#allocation4 + $0x8] sm:$0xff] %vm44, 0.0
    $region21: #{tpu_custom_call.1} parent=1 // pred_fallthru
      _
    %v51 = vld [vmem:[#allocation5] sm:$0xff]
    %v52 = vld [vmem:[#allocation5 + $0x8] sm:$0xff]
    %v53 = vld [vmem:[#allocation8] sm:$0xff]
    %v54 = vld [vmem:[#allocation8 + $0x8] sm:$0xff]
    %v55 = vlaneseq
    %v56 = vand.u32 %v55, 127
    %s57 = smul.u32 0, 128
    %v58 = vstv %s57
    %v59 = vsub.s32 %v53, %v58
    %v60 = vsub.s32 %v54, %v58
    %61 = vset.pattern.permute.xlu0 0
    %62 = vperm.xlu0 %61, %v59
    %v63 = vpop.permute.xlu0 %62
    %64 = vset.pattern.permute.xlu0 0
    %65 = vperm.xlu0 %64, %v60
    %v66 = vpop.permute.xlu0 %65
    %vm67 = vcmp.eq.s32.totalorder %v56, %v63
    %vm68 = vcmp.eq.s32.totalorder %v56, %v66
    %v69 = vsel %vm67, %v51, 0.0
    %v70 = vsel %vm68, %v52, 0.0
    %v71 = vld [vmem:[#allocation4] sm:$0xff]
    %v72 = vld [vmem:[#allocation4 + $0x8] sm:$0xff]
    %73 = vadd.xlane.f32.xlu0 %v69
    %v74 = vpop.xlane.xlu0 %73
    %75 = vadd.xlane.f32.xlu0 %v70
    %v76 = vpop.xlane.xlu0 %75
    %v77 = vadd.f32 %v71, %v74
    %v78 = vadd.f32 %v72, %v76
    %vm79 = vcmask 7168
    %80 = vst.msk [vmem:[#allocation4] sm:$0xff] %vm79, %v77
    %81 = vst.msk [vmem:[#allocation4 + $0x8] sm:$0xff] %vm79, %v78
    %82 = vmax.xlane.f32.xlu0 %v51
    %v83 = vpop.xlane.xlu0 %82
    %84 = vmax.xlane.f32.xlu0 %v52
    %v85 = vpop.xlane.xlu0 %84
    %v86 = vld [vmem:[#allocation2] sm:$0xff]
    %v87 = vld [vmem:[#allocation2 + $0x8] sm:$0xff]
    %v88 = vmax.f32 %v86, %v83
    %v89 = vmax.f32 %v87, %v85
    %v90 = vld [vmem:[#allocation3] sm:$0xff]
    %v91 = vld [vmem:[#allocation3 + $0x8] sm:$0xff]
    %v92 = vsub.f32 %v86, %v88
    %v93 = vsub.f32 %v87, %v89
    %v94 = vmul.f32 %v92, 1.442695
    %v95 = vpow.pop %v94
    %v96 = vmul.f32 %v93, 1.442695
    %v97 = vpow.pop %v96
    %v98 = vmul.f32 %v90, %v95
    %v99 = vmul.f32 %v91, %v97
    %101 = vset.pattern.permute.xlu0 0
    %102 = vperm.xlu0 %101, %v88
    %v103 = vpop.permute.xlu0 %102
    %106 = vset.pattern.permute.xlu0 0
    %107 = vperm.xlu0 %106, %v89
    %v108 = vpop.permute.xlu0 %107
    %v110 = vsub.f32 %v51, %v103
    %v111 = vsub.f32 %v52, %v108
    %v112 = vmul.f32 %v110, 1.442695
    %v113 = vpow.pop %v112
    %v114 = vmul.f32 %v111, 1.442695
    %v115 = vpow.pop %v114
    %116 = vadd.xlane.f32.xlu0 %v113
    %v117 = vpop.xlane.xlu0 %116
    %118 = vadd.xlane.f32.xlu0 %v115
    %v119 = vpop.xlane.xlu0 %118
    %v120 = vadd.f32 %v98, %v117
    %v121 = vadd.f32 %v99, %v119
    %122 = vst.msk [vmem:[#allocation3] sm:$0xff] %vm79, %v120
    %123 = vst.msk [vmem:[#allocation3 + $0x8] sm:$0xff] %vm79, %v121
    %124 = vst.msk [vmem:[#allocation2] sm:$0xff] %vm79, %v88
    %125 = vst.msk [vmem:[#allocation2 + $0x8] sm:$0xff] %vm79, %v89
    // Predicated region
    $region22: #{tpu_custom_call.1} parent=1 // pred_check
      %p126 = pneg %p40
    $region23: #{tpu_custom_call.1} parent=1 // pred_check_branch
      %128 = sbr.rel (%p126) target = $region25
    $region24: #{tpu_custom_call.1} parent=1 // pred_region
      %v129 = vld [vmem:[#allocation3] sm:$0xff]
      %v130 = vld [vmem:[#allocation3 + $0x8] sm:$0xff]
      %v131 = vlog2.pop %v129
      %v132 = vmul.f32 %v131, 0.6931472
      %v133 = vlog2.pop %v130
      %v134 = vmul.f32 %v133, 0.6931472
      %v135 = vld [vmem:[#allocation2] sm:$0xff]
      %v136 = vld [vmem:[#allocation2 + $0x8] sm:$0xff]
      %v137 = vadd.f32 %v132, %v135
      %v138 = vadd.f32 %v134, %v136
      %v139 = vld [vmem:[#allocation4] sm:$0xff]
      %v140 = vld [vmem:[#allocation4 + $0x8] sm:$0xff]
      %v141 = vsub.f32 %v137, %v139
      %v142 = vsub.f32 %v138, %v140
      %vm143 = vcmp.ne.s32.totalorder %v53, 1
      %vm144 = vcmp.ne.s32.totalorder %v54, 1
      %v145 = vsel %vm143, %v141, 0.0
      %v146 = vsel %vm144, %v142, 0.0
      %147 = vst.msk [vmem:[#allocation10] sm:$0xff] %vm79, %v145
      %148 = vst.msk [vmem:[#allocation10 + $0x8] sm:$0xff] %vm79, %v146
    $region25: #{tpu_custom_call.1} parent=1 // pred_fallthru
      _
    // Predicated region
    $region26: #{tpu_custom_call.1} parent=1 // pred_check
      _
    $region27: #{tpu_custom_call.1} parent=1 // pred_check_branch
      %150 = sbr.rel (0) target = $region29
    $region28: #{tpu_custom_call.1} parent=1 // pred_region
      %s152 = ssub.s32 256, 256
      %153 = vsyncadd [#allocation7], %s152
      %s154 = sshll.u32 [#allocation10], 4
      %s155 = int_to_ptr.vmem [resolvable:$true] %s154
      %160 = dma.vmem_to_hbm [thread:$0]  %s155, 256, %s2, [#allocation7], 128, 128, 8
    $region29: #{tpu_custom_call.1} parent=1 // pred_fallthru
      _
    // Predicated region
    $region30: #{tpu_custom_call.1} parent=1 // pred_check
      _
    $region31: #{tpu_custom_call.1} parent=1 // pred_check_branch
      %162 = sbr.rel (0) target = $region33
    $region32: #{tpu_custom_call.1} parent=1 // pred_region
      %163 = dma.done [#allocation7], 256
    $region33: #{tpu_custom_call.1} parent=1 // pred_fallthru
      _
    %164 = vsyncpa [#allocation6], 1
    %165 = vsyncpa [#allocation9], 1
    %166 = vsyncpa [#allocation7], 1

</llo_original>
